<compile_context>
chip_gen: v5e
topology: v5e:2x2
jax: 0.10.0
libtpu: 0.0.40
codegen_flags: <defaults>
</compile_context>

<pallas_src>
import functools

import jax
import jax.numpy as jnp
import numpy as np
from jax.experimental import pallas as pl
from jax.experimental.pallas import tpu as pltpu

BN_EPS = 1e-5
LANE = 128           # feature dims padded to multiples of this (lane-dense)
SUBLANE = 8          # f32 stats rows per tile
BATCH_ALIGN = 16     # bf16 packs 16 sublanes per vreg
PASS2_MAX_TILE = 2048


def _round_up(n, m):
    return ((n + m - 1) // m) * m


def _chip_config():
    """Generation-aware VMEM limit / tile sizing (conservative fallback)."""
    vmem_phys = 64 << 20
    try:
        vmem_phys = int(pltpu.get_tpu_info().vmem_capacity_bytes)
    except Exception:
        pass
    if vmem_phys >= (128 << 20):          # v5e / v6e: 128 MiB physical VMEM
        return (100 << 20), 256, False
    # v7x: 64 MiB per TensorCore, 2 TensorCores share the 'parallel' grid axis
    return (48 << 20), 256, True


def _sigmoid(y, exact):
    t = 1.0 + jnp.exp(-y)
    if exact:
        return 1.0 / t
    return pl.reciprocal(t, approx=True)   # EUP slot; ~1e-3 rel. error


# ---------------------------------------------------------------------------
# Fused single-pass kernel (whole padded batch in one tile).
# fc1/ReLU/fc2/ReLU/fc3 + full-batch BN (training mode) + sigmoid.
# ---------------------------------------------------------------------------
def fused_kernel(x_ref, w1_ref, b1_ref, w2_ref, b2_ref, w3_ref,
                 gamma_ref, beta_ref, o_ref, *, valid_batch, exact_sigmoid):
    mxu = w1_ref.dtype

    h1 = jnp.dot(x_ref[...], w1_ref[...],
                 preferred_element_type=jnp.float32) + b1_ref[...]
    h1 = jnp.maximum(h1, 0.0)
    h2 = jnp.dot(h1.astype(mxu), w2_ref[...],
                 preferred_element_type=jnp.float32) + b2_ref[...]
    h2 = jnp.maximum(h2, 0.0)
    h3 = jnp.dot(h2.astype(mxu), w3_ref[...],
                 preferred_element_type=jnp.float32)

    # Full-batch BN stats (padded rows excluded); centered variance for safety.
    row = jax.lax.broadcasted_iota(jnp.int32, h3.shape, 0)
    valid = row < valid_batch
    inv_b = 1.0 / valid_batch
    mean = jnp.sum(jnp.where(valid, h3, 0.0), axis=0, keepdims=True) * inv_b
    diff = jnp.where(valid, h3 - mean, 0.0)
    var = jnp.sum(diff * diff, axis=0, keepdims=True) * inv_b
    inv_std = jax.lax.rsqrt(var + BN_EPS)

    scale = gamma_ref[...] * inv_std
    shift = beta_ref[...] - mean * scale
    o_ref[...] = _sigmoid(h3 * scale + shift, exact_sigmoid)


# ---------------------------------------------------------------------------
# Pass 1 (multi-tile path): fc stack; h3 stored in bf16; packed per-tile stats.
# ---------------------------------------------------------------------------
def fc_stack_kernel(x_ref, w1_ref, b1_ref, w2_ref, b2_ref, w3_ref,
                    h3_ref, stats_ref, *, valid_batch, tile_m):
    mxu = w1_ref.dtype

    h1 = jnp.dot(x_ref[...], w1_ref[...],
                 preferred_element_type=jnp.float32) + b1_ref[...]
    h1 = jnp.maximum(h1, 0.0)
    h2 = jnp.dot(h1.astype(mxu), w2_ref[...],
                 preferred_element_type=jnp.float32) + b2_ref[...]
    h2 = jnp.maximum(h2, 0.0)
    h3 = jnp.dot(h2.astype(mxu), w3_ref[...],
                 preferred_element_type=jnp.float32)

    # Store h3 in bf16 (halves HBM traffic); stats from the f32 accumulator.
    h3_ref[...] = h3.astype(h3_ref.dtype)

    row = (pl.program_id(0) * tile_m
           + jax.lax.broadcasted_iota(jnp.int32, h3.shape, 0))
    hm = jnp.where(row < valid_batch, h3, 0.0)
    s = jnp.sum(hm, axis=0, keepdims=True)        # [1, Xp] masked sum
    q = jnp.sum(hm * h3, axis=0, keepdims=True)   # [1, Xp] masked sum of squares
    stats = jnp.concatenate([s, q], axis=-1)      # [1, 2*Xp] single lane-dense slab
    stats_ref[...] = jnp.broadcast_to(stats, stats_ref.shape)


# ---------------------------------------------------------------------------
# Pass 2 (multi-tile path): folded BN affine + sigmoid. Pure elementwise.
# ---------------------------------------------------------------------------
def bn_sigmoid_kernel(h3_ref, scale_ref, shift_ref, o_ref, *, exact_sigmoid):
    y = h3_ref[...].astype(jnp.float32) * scale_ref[...] + shift_ref[...]
    o_ref[...] = _sigmoid(y, exact_sigmoid)


# ---------------------------------------------------------------------------
# Parameter preparation (pad to lane-dense shapes, cast weights for the MXU).
# ---------------------------------------------------------------------------
def pad_params(params, matmul_dtype=jnp.bfloat16):
    w1, b1, w2, b2, w3, b3, gamma, beta = params
    del b3  # exactly cancelled by BN's batch-mean subtraction
    z_dim, h_dim = w1.shape
    X_dim = w3.shape[1]
    zp, hp, Xp = (_round_up(d, LANE) for d in (z_dim, h_dim, X_dim))

    def pad2(a, rows, cols, dtype):
        return jnp.pad(a, ((0, rows - a.shape[0]),
                           (0, cols - a.shape[1]))).astype(dtype)

    return {
        "w1": pad2(w1, zp, hp, matmul_dtype),
        "b1": pad2(b1, 1, hp, jnp.float32),
        "w2": pad2(w2, hp, hp, matmul_dtype),
        "b2": pad2(b2, 1, hp, jnp.float32),
        "w3": pad2(w3, hp, Xp, matmul_dtype),
        "gamma": pad2(gamma, 1, Xp, jnp.float32),
        "beta": pad2(beta, 1, Xp, jnp.float32),
        "dims": (z_dim, h_dim, X_dim),
    }


# ---------------------------------------------------------------------------
# Wrapper.
# ---------------------------------------------------------------------------
def generator_fc(x, p, *, tile_m=None, exact_sigmoid=False):
    """x: [B, z_dim] float32 -> [B, X_dim] float32 (BatchNorm in training mode)."""
    B, z_dim = x.shape
    _, _, X_dim = p["dims"]
    w1, b1, w2, b2, w3 = p["w1"], p["b1"], p["w2"], p["b2"], p["w3"]
    zp, hp = w1.shape
    Xp = w3.shape[1]
    mxu_dtype = w1.dtype
    itemsize = jnp.dtype(mxu_dtype).itemsize

    vmem_limit, chip_tile_m, prefer_even_tiles = _chip_config()
    if tile_m is None:
        tile_m = chip_tile_m

    # Batch tiling (bf16 packs 16 sublanes -> align batch tiles to 16).
    tm = min(tile_m, _round_up(B, BATCH_ALIGN))
    b_pad = _round_up(B, tm)
    n_tiles = b_pad // tm
    if prefer_even_tiles and 1 < n_tiles <= 7 and n_tiles % 2 == 1:
        n_tiles += 1                      # keep both v7x TensorCores busy
        b_pad = n_tiles * tm

    weight_bytes = itemsize * (zp * hp + hp * hp + hp * Xp)
    # TODO(synk): if resident weights exceed ~half the VMEM limit (very large
    # h_dim on v7x's 64 MiB), tile fc2/fc3 over an 'arbitrary' K grid axis with
    # a VMEM accumulator instead of keeping all three weights resident.
    del weight_bytes

    x_p = jnp.pad(x, ((0, b_pad - B), (0, zp - z_dim))).astype(mxu_dtype)

    matmul_flops = 2 * b_pad * (zp * hp + hp * hp + hp * Xp)
    weights_read = itemsize * (zp * hp + hp * hp + hp * Xp) + 4 * 2 * hp
    resident = lambda shape: pl.BlockSpec(shape, lambda i: (0, 0))

    # ---------------- fused single-pass path (whole batch in one tile) ------
    if n_tiles == 1:
        ce = pl.CostEstimate(
            flops=int(matmul_flops + 8 * b_pad * Xp),
            transcendentals=int(b_pad * Xp),
            bytes_accessed=int(b_pad * zp * itemsize + weights_read
                               + 2 * 4 * Xp + b_pad * Xp * 4))
        out = pl.pallas_call(
            functools.partial(fused_kernel, valid_batch=B,
                              exact_sigmoid=exact_sigmoid),
            grid=(1,),
            out_shape=jax.ShapeDtypeStruct((b_pad, Xp), jnp.float32),
            in_specs=[
                pl.BlockSpec((b_pad, zp), lambda i: (0, 0)),
                resident((zp, hp)),
                resident((1, hp)),
                resident((hp, hp)),
                resident((1, hp)),
                resident((hp, Xp)),
                resident((1, Xp)),
                resident((1, Xp)),
            ],
            out_specs=pl.BlockSpec((b_pad, Xp), lambda i: (0, 0)),
            compiler_params=pltpu.CompilerParams(
                dimension_semantics=("arbitrary",),
                vmem_limit_bytes=int(vmem_limit)),
            cost_estimate=ce,
        )(x_p, w1, b1, w2, b2, w3, p["gamma"], p["beta"])
        return out[:B, :X_dim]

    # ---------------- multi-tile path ---------------------------------------
    compiler_params = pltpu.CompilerParams(
        dimension_semantics=("parallel",),
        vmem_limit_bytes=int(vmem_limit))

    # ---- pass 1: fc stack (h3 in bf16) + packed per-tile batch statistics --
    ce1 = pl.CostEstimate(
        flops=int(matmul_flops),
        transcendentals=0,
        bytes_accessed=int(b_pad * zp * itemsize + weights_read
                           + b_pad * Xp * 2 + n_tiles * SUBLANE * 2 * Xp * 4))
    h3, pstats = pl.pallas_call(
        functools.partial(fc_stack_kernel, valid_batch=B, tile_m=tm),
        grid=(n_tiles,),
        out_shape=(
            jax.ShapeDtypeStruct((b_pad, Xp), jnp.bfloat16),
            jax.ShapeDtypeStruct((n_tiles * SUBLANE, 2 * Xp), jnp.float32),
        ),
        in_specs=[
            pl.BlockSpec((tm, zp), lambda i: (i, 0)),   # batch-tiled input
            resident((zp, hp)),                         # weights stay resident
            resident((1, hp)),
            resident((hp, hp)),
            resident((1, hp)),
            resident((hp, Xp)),
        ],
        out_specs=(
            pl.BlockSpec((tm, Xp), lambda i: (i, 0)),
            pl.BlockSpec((SUBLANE, 2 * Xp), lambda i: (i, 0)),
        ),
        compiler_params=compiler_params,
        cost_estimate=ce1,
    )(x_p, w1, b1, w2, b2, w3)

    # ---- tiny cross-tile reduction + BN affine folding (plain XLA) ---------
    stats = pstats.reshape(n_tiles, SUBLANE, 2 * Xp)[:, 0, :].sum(axis=0)
    total, total_sq = stats[:Xp], stats[Xp:]
    mean = total / B
    var = total_sq / B - mean * mean        # biased variance (BN training mode)
    inv_std = jax.lax.rsqrt(var + BN_EPS)
    scale = p["gamma"] * inv_std[None, :]   # [1, Xp]
    shift = p["beta"] - mean[None, :] * scale

    # ---- pass 2: normalize + sigmoid, with a large mem-bound-friendly tile -
    tm2 = tm
    for d in range(max(1, min(n_tiles, PASS2_MAX_TILE // tm)), 0, -1):
        if n_tiles % d == 0:
            tm2 = tm * d
            break
    n_tiles2 = b_pad // tm2

    ce2 = pl.CostEstimate(
        flops=int(3 * b_pad * Xp),
        transcendentals=int(b_pad * Xp),
        bytes_accessed=int(b_pad * Xp * (2 + 4) + 2 * 4 * Xp))
    out = pl.pallas_call(
        functools.partial(bn_sigmoid_kernel, exact_sigmoid=exact_sigmoid),
        grid=(n_tiles2,),
        out_shape=jax.ShapeDtypeStruct((b_pad, Xp), jnp.float32),
        in_specs=[
            pl.BlockSpec((tm2, Xp), lambda i: (i, 0)),
            resident((1, Xp)),
            resident((1, Xp)),
        ],
        out_specs=pl.BlockSpec((tm2, Xp), lambda i: (i, 0)),
        compiler_params=compiler_params,
        cost_estimate=ce2,
    )(h3, scale, shift)

    return out[:B, :X_dim]


# ---------------------------------------------------------------------------
# Module-faithful init + references.
# ---------------------------------------------------------------------------
def init_params(key, z_dim, h_dim, X_dim):
    """Deterministic init mirroring initialize_weights: W ~ N(0, 0.02), b = 0."""
    k1, k2, k3 = jax.random.split(key, 3)
    # stored as [in, out] (transpose of PyTorch's [out, in])
    w1 = 0.02 * jax.random.normal(k1, (z_dim, h_dim), jnp.float32)
    b1 = jnp.zeros((1, h_dim), jnp.float32)
    w2 = 0.02 * jax.random.normal(k2, (h_dim, h_dim), jnp.float32)
    b2 = jnp.zeros((1, h_dim), jnp.float32)
    w3 = 0.02 * jax.random.normal(k3, (h_dim, X_dim), jnp.float32)
    b3 = jnp.zeros((1, X_dim), jnp.float32)
    # BatchNorm1d default affine params (initialize_weights leaves BN untouched)
    gamma = jnp.ones((1, X_dim), jnp.float32)
    beta = jnp.zeros((1, X_dim), jnp.float32)
    return (w1, b1, w2, b2, w3, b3, gamma, beta)


def generator_fc_ref(x, params):
    """Pure-f32 reference matching the PyTorch module (BatchNorm1d training mode)."""
    w1, b1, w2, b2, w3, b3, gamma, beta = params
    h1 = jnp.maximum(x @ w1 + b1, 0.0)
    h2 = jnp.maximum(h1 @ w2 + b2, 0.0)
    h3 = h2 @ w3 + b3
    mean = jnp.mean(h3, axis=0, keepdims=True)
    var = jnp.mean((h3 - mean) ** 2, axis=0, keepdims=True)
    y = gamma * (h3 - mean) * jax.lax.rsqrt(var + BN_EPS) + beta
    return jax.nn.sigmoid(y)


def generator_fc_mixed_ref(x, params, matmul_dtype, cast_h3=False):
    """Same math with the kernel's matmul precision (bf16 inputs, f32 accumulate).
    cast_h3=True mimics the multi-tile path, which round-trips h3 through bf16
    (BN statistics are still taken from the f32 accumulator)."""
    w1, b1, w2, b2, w3, b3, gamma, beta = params
    dot = lambda a, b: jnp.dot(a.astype(matmul_dtype), b.astype(matmul_dtype),
                               preferred_element_type=jnp.float32)
    h1 = jnp.maximum(dot(x, w1) + b1, 0.0)
    h2 = jnp.maximum(dot(h1, w2) + b2, 0.0)
    h3 = dot(h2, w3) + b3
    mean = jnp.mean(h3, axis=0, keepdims=True)
    var = jnp.mean((h3 - mean) ** 2, axis=0, keepdims=True)
    if cast_h3:
        h3 = h3.astype(jnp.bfloat16).astype(jnp.float32)
    y = gamma * (h3 - mean) * jax.lax.rsqrt(var + BN_EPS) + beta
    return jax.nn.sigmoid(y)


if __name__ == "__main__":
    key = jax.random.PRNGKey(0)
    k_params, k_x1, k_x2 = jax.random.split(key, 3)

    # Small shapes consistent with the module's forward: x is [batch, z_dim].
    B, z_dim, h_dim, X_dim = 8, 16, 32, 64
    params = init_params(k_params, z_dim, h_dim, X_dim)
    padded = pad_params(params, matmul_dtype=jnp.bfloat16)

    # ---- fused single-pass path (small batch fits in one tile) -------------
    x1 = jax.random.normal(k_x1, (B, z_dim), jnp.float32)
    out1 = jax.block_until_ready(generator_fc(x1, padded))
    assert out1.shape == (B, X_dim)
    np.testing.assert_allclose(
        np.asarray(out1),
        np.asarray(generator_fc_mixed_ref(x1, params, jnp.bfloat16)),
        rtol=5e-3, atol=5e-3)
    np.testing.assert_allclose(
        np.asarray(out1), np.asarray(generator_fc_ref(x1, params)),
        rtol=5e-2, atol=5e-2)

    # ---- multi-tile path (forced via a small tile_m) ------------------------
    B2 = 100
    x2 = jax.random.normal(k_x2, (B2, z_dim), jnp.float32)
    out2 = jax.block_until_ready(generator_fc(x2, padded, tile_m=64))
    assert out2.shape == (B2, X_dim)
    np.testing.assert_allclose(
        np.asarray(out2),
        np.asarray(generator_fc_mixed_ref(x2, params, jnp.bfloat16, cast_h3=True)),
        rtol=5e-3, atol=5e-3)
    np.testing.assert_allclose(
        np.asarray(out2), np.asarray(generator_fc_ref(x2, params)),
        rtol=5e-2, atol=5e-2)

    print("KERNEL_OK")
</pallas_src>

<mosaic_0001>
module attributes {stable_mosaic.version = 11 : i64} {
  func.func @fused_kernel(%arg0: i32, %arg1: memref<16x128xbf16, #tpu.memory_space<vmem>>, %arg2: memref<128x128xbf16, #tpu.memory_space<vmem>>, %arg3: memref<1x128xf32, #tpu.memory_space<vmem>>, %arg4: memref<128x128xbf16, #tpu.memory_space<vmem>>, %arg5: memref<1x128xf32, #tpu.memory_space<vmem>>, %arg6: memref<128x128xbf16, #tpu.memory_space<vmem>>, %arg7: memref<1x128xf32, #tpu.memory_space<vmem>>, %arg8: memref<1x128xf32, #tpu.memory_space<vmem>>, %arg9: memref<16x128xf32, #tpu.memory_space<vmem>>) attributes {dimension_semantics = [#tpu.dimension_semantics<arbitrary>], iteration_bounds = array<i64: 1>, scalar_prefetch = 0 : i64, scratch_operands = 0 : i64, tpu.core_type = #tpu.core_type<tc>, window_params = [{pipeline_mode = #tpu.pipeline_mode<synchronous>, transform_indices = @transform_0, window_bounds = array<i64: 16, 128>}, {pipeline_mode = #tpu.pipeline_mode<synchronous>, transform_indices = @transform_1, window_bounds = array<i64: 128, 128>}, {pipeline_mode = #tpu.pipeline_mode<synchronous>, transform_indices = @transform_2, window_bounds = array<i64: 1, 128>}, {pipeline_mode = #tpu.pipeline_mode<synchronous>, transform_indices = @transform_3, window_bounds = array<i64: 128, 128>}, {pipeline_mode = #tpu.pipeline_mode<synchronous>, transform_indices = @transform_4, window_bounds = array<i64: 1, 128>}, {pipeline_mode = #tpu.pipeline_mode<synchronous>, transform_indices = @transform_5, window_bounds = array<i64: 128, 128>}, {pipeline_mode = #tpu.pipeline_mode<synchronous>, transform_indices = @transform_6, window_bounds = array<i64: 1, 128>}, {pipeline_mode = #tpu.pipeline_mode<synchronous>, transform_indices = @transform_7, window_bounds = array<i64: 1, 128>}, {pipeline_mode = #tpu.pipeline_mode<synchronous>, transform_indices = @transform_8, window_bounds = array<i64: 16, 128>}]} {
    %c0 = arith.constant 0 : index
    %c0_0 = arith.constant 0 : index
    %0 = vector.load %arg1[%c0, %c0_0] : memref<16x128xbf16, #tpu.memory_space<vmem>>, vector<16x128xbf16>
    %c0_1 = arith.constant 0 : index
    %c0_2 = arith.constant 0 : index
    %1 = vector.load %arg2[%c0_1, %c0_2] : memref<128x128xbf16, #tpu.memory_space<vmem>>, vector<128x128xbf16>
    %cst = arith.constant dense<0.000000e+00> : vector<16x128xf32>
    %2 = tpu.matmul %0, %1, %cst {dimension_numbers = #tpu.dot_dimension_numbers<[1], [0], [0], [1], [0, 0, 1, 1], [], []>} : vector<16x128xbf16>, vector<128x128xbf16>, vector<16x128xf32> -> vector<16x128xf32>
    %c0_3 = arith.constant 0 : index
    %c0_4 = arith.constant 0 : index
    %3 = vector.load %arg3[%c0_3, %c0_4] : memref<1x128xf32, #tpu.memory_space<vmem>>, vector<1x128xf32>
    %4 = vector.broadcast %3 : vector<1x128xf32> to vector<16x128xf32>
    %5 = arith.addf %2, %4 : vector<16x128xf32>
    %cst_5 = arith.constant 0.000000e+00 : f32
    %6 = vector.broadcast %cst_5 : f32 to vector<16x128xf32>
    %7 = arith.maximumf %5, %6 : vector<16x128xf32>
    %8 = arith.truncf %7 : vector<16x128xf32> to vector<16x128xbf16>
    %c0_6 = arith.constant 0 : index
    %c0_7 = arith.constant 0 : index
    %9 = vector.load %arg4[%c0_6, %c0_7] : memref<128x128xbf16, #tpu.memory_space<vmem>>, vector<128x128xbf16>
    %cst_8 = arith.constant dense<0.000000e+00> : vector<16x128xf32>
    %10 = tpu.matmul %8, %9, %cst_8 {dimension_numbers = #tpu.dot_dimension_numbers<[1], [0], [0], [1], [0, 0, 1, 1], [], []>} : vector<16x128xbf16>, vector<128x128xbf16>, vector<16x128xf32> -> vector<16x128xf32>
    %c0_9 = arith.constant 0 : index
    %c0_10 = arith.constant 0 : index
    %11 = vector.load %arg5[%c0_9, %c0_10] : memref<1x128xf32, #tpu.memory_space<vmem>>, vector<1x128xf32>
    %12 = vector.broadcast %11 : vector<1x128xf32> to vector<16x128xf32>
    %13 = arith.addf %10, %12 : vector<16x128xf32>
    %cst_11 = arith.constant 0.000000e+00 : f32
    %14 = vector.broadcast %cst_11 : f32 to vector<16x128xf32>
    %15 = arith.maximumf %13, %14 : vector<16x128xf32>
    %16 = arith.truncf %15 : vector<16x128xf32> to vector<16x128xbf16>
    %c0_12 = arith.constant 0 : index
    %c0_13 = arith.constant 0 : index
    %17 = vector.load %arg6[%c0_12, %c0_13] : memref<128x128xbf16, #tpu.memory_space<vmem>>, vector<128x128xbf16>
    %cst_14 = arith.constant dense<0.000000e+00> : vector<16x128xf32>
    %18 = tpu.matmul %16, %17, %cst_14 {dimension_numbers = #tpu.dot_dimension_numbers<[1], [0], [0], [1], [0, 0, 1, 1], [], []>} : vector<16x128xbf16>, vector<128x128xbf16>, vector<16x128xf32> -> vector<16x128xf32>
    %19 = tpu.iota {dimensions = array<i32: 0>} : vector<16x128xi32>
    %c8_i32 = arith.constant 8 : i32
    %20 = vector.broadcast %c8_i32 : i32 to vector<16x128xi32>
    %21 = arith.cmpi slt, %19, %20 : vector<16x128xi32>
    %cst_15 = arith.constant 0.000000e+00 : f32
    %22 = vector.broadcast %cst_15 : f32 to vector<16x128xf32>
    %23 = arith.select %21, %18, %22 : vector<16x128xi1>, vector<16x128xf32>
    %cst_16 = arith.constant dense<0.000000e+00> : vector<128xf32>
    %24 = vector.multi_reduction <add>, %23, %cst_16 [0] : vector<16x128xf32> to vector<128xf32>
    %25 = vector.shape_cast %24 : vector<128xf32> to vector<1x128xf32>
    %cst_17 = arith.constant 1.250000e-01 : f32
    %26 = vector.broadcast %cst_17 : f32 to vector<1x128xf32>
    %27 = arith.mulf %25, %26 : vector<1x128xf32>
    %28 = vector.broadcast %27 : vector<1x128xf32> to vector<16x128xf32>
    %29 = arith.subf %18, %28 : vector<16x128xf32>
    %cst_18 = arith.constant 0.000000e+00 : f32
    %30 = vector.broadcast %cst_18 : f32 to vector<16x128xf32>
    %31 = arith.select %21, %29, %30 : vector<16x128xi1>, vector<16x128xf32>
    %32 = arith.mulf %31, %31 : vector<16x128xf32>
    %cst_19 = arith.constant dense<0.000000e+00> : vector<128xf32>
    %33 = vector.multi_reduction <add>, %32, %cst_19 [0] : vector<16x128xf32> to vector<128xf32>
    %34 = vector.shape_cast %33 : vector<128xf32> to vector<1x128xf32>
    %cst_20 = arith.constant 1.250000e-01 : f32
    %35 = vector.broadcast %cst_20 : f32 to vector<1x128xf32>
    %36 = arith.mulf %34, %35 : vector<1x128xf32>
    %cst_21 = arith.constant 9.99999974E-6 : f32
    %37 = vector.broadcast %cst_21 : f32 to vector<1x128xf32>
    %38 = arith.addf %36, %37 : vector<1x128xf32>
    %39 = math.rsqrt %38 : vector<1x128xf32>
    %c0_22 = arith.constant 0 : index
    %c0_23 = arith.constant 0 : index
    %40 = vector.load %arg7[%c0_22, %c0_23] : memref<1x128xf32, #tpu.memory_space<vmem>>, vector<1x128xf32>
    %41 = arith.mulf %40, %39 : vector<1x128xf32>
    %c0_24 = arith.constant 0 : index
    %c0_25 = arith.constant 0 : index
    %42 = vector.load %arg8[%c0_24, %c0_25] : memref<1x128xf32, #tpu.memory_space<vmem>>, vector<1x128xf32>
    %43 = arith.mulf %27, %41 : vector<1x128xf32>
    %44 = arith.subf %42, %43 : vector<1x128xf32>
    %45 = vector.broadcast %41 : vector<1x128xf32> to vector<16x128xf32>
    %46 = arith.mulf %18, %45 : vector<16x128xf32>
    %47 = vector.broadcast %44 : vector<1x128xf32> to vector<16x128xf32>
    %48 = arith.addf %46, %47 : vector<16x128xf32>
    %cst_26 = arith.constant 0.000000e+00 : f32
    %49 = vector.broadcast %cst_26 : f32 to vector<16x128xf32>
    %50 = arith.subf %49, %48 : vector<16x128xf32>
    %51 = math.exp %50 : vector<16x128xf32>
    %cst_27 = arith.constant 1.000000e+00 : f32
    %52 = vector.broadcast %cst_27 : f32 to vector<16x128xf32>
    %53 = arith.addf %52, %51 : vector<16x128xf32>
    %54 = tpu.reciprocal %53 {approx = true} : vector<16x128xf32> -> vector<16x128xf32>
    %c0_28 = arith.constant 0 : index
    %c0_29 = arith.constant 0 : index
    %55 = vector.load %arg9[%c0_28, %c0_29] : memref<16x128xf32, #tpu.memory_space<vmem>>, vector<16x128xf32>
    tpu.vector_store %arg9[%c0_28, %c0_29], %54 {strides = array<i32>} : memref<16x128xf32, #tpu.memory_space<vmem>>, vector<16x128xf32>,
    return
  }
  func.func @transform_0(%arg0: i32) -> (i32, i32) {
    %c0_i32 = arith.constant 0 : i32
    %c0_i32_0 = arith.constant 0 : i32
    %c0_i32_1 = arith.constant 0 : i32
    return %c0_i32, %c0_i32_0 : i32, i32
  }
  func.func @transform_1(%arg0: i32) -> (i32, i32) {
    %c0_i32 = arith.constant 0 : i32
    %c0_i32_0 = arith.constant 0 : i32
    %c0_i32_1 = arith.constant 0 : i32
    return %c0_i32, %c0_i32_0 : i32, i32
  }
  func.func @transform_2(%arg0: i32) -> (i32, i32) {
    %c0_i32 = arith.constant 0 : i32
    %c0_i32_0 = arith.constant 0 : i32
    %c0_i32_1 = arith.constant 0 : i32
    return %c0_i32, %c0_i32_0 : i32, i32
  }
  func.func @transform_3(%arg0: i32) -> (i32, i32) {
    %c0_i32 = arith.constant 0 : i32
    %c0_i32_0 = arith.constant 0 : i32
    %c0_i32_1 = arith.constant 0 : i32
    return %c0_i32, %c0_i32_0 : i32, i32
  }
  func.func @transform_4(%arg0: i32) -> (i32, i32) {
    %c0_i32 = arith.constant 0 : i32
    %c0_i32_0 = arith.constant 0 : i32
    %c0_i32_1 = arith.constant 0 : i32
    return %c0_i32, %c0_i32_0 : i32, i32
  }
  func.func @transform_5(%arg0: i32) -> (i32, i32) {
    %c0_i32 = arith.constant 0 : i32
    %c0_i32_0 = arith.constant 0 : i32
    %c0_i32_1 = arith.constant 0 : i32
    return %c0_i32, %c0_i32_0 : i32, i32
  }
  func.func @transform_6(%arg0: i32) -> (i32, i32) {
    %c0_i32 = arith.constant 0 : i32
    %c0_i32_0 = arith.constant 0 : i32
    %c0_i32_1 = arith.constant 0 : i32
    return %c0_i32, %c0_i32_0 : i32, i32
  }
  func.func @transform_7(%arg0: i32) -> (i32, i32) {
    %c0_i32 = arith.constant 0 : i32
    %c0_i32_0 = arith.constant 0 : i32
    %c0_i32_1 = arith.constant 0 : i32
    return %c0_i32, %c0_i32_0 : i32, i32
  }
  func.func @transform_8(%arg0: i32) -> (i32, i32) {
    %c0_i32 = arith.constant 0 : i32
    %c0_i32_0 = arith.constant 0 : i32
    %c0_i32_1 = arith.constant 0 : i32
    return %c0_i32, %c0_i32_0 : i32, i32
  }
}

</mosaic_0001>

<llo_original>
// kernel: tpu_custom_call.1
$region0: #{tpu_custom_call.1}
  #allocation0 [shape = 'u32[]', space=smem, size = 0x4, offset = 0x4, fixed_abs, tag = 'smem constant byte address 0x4 - core index']
  #allocation1 [shape = 'u32[72,128]{1,0:T(1,128)}', space=vmem, size = 0x9000, scoped, tag = 'internal scratch']
  %s0 = inlined_call_operand.hbm [shape: bf16[16,128], index: 0, kind: input, shape index: {}]
  %s1 = inlined_call_operand.hbm [shape: bf16[128,128], index: 1, kind: input, shape index: {}]
  %s2 = inlined_call_operand.vmem [shape: f32[1,128], index: 2, kind: input, shape index: {}]
  %s3 = inlined_call_operand.hbm [shape: bf16[128,128], index: 3, kind: input, shape index: {}]
  %s4 = inlined_call_operand.vmem [shape: f32[1,128], index: 4, kind: input, shape index: {}]
  %s5 = inlined_call_operand.hbm [shape: bf16[128,128], index: 5, kind: input, shape index: {}]
  %s6 = inlined_call_operand.vmem [shape: f32[1,128], index: 6, kind: input, shape index: {}]
  %s7 = inlined_call_operand.vmem [shape: f32[1,128], index: 7, kind: input, shape index: {}]
  %s8 = inlined_call_operand.hbm [shape: f32[16,128], index: 8, kind: output, shape index: {}]
  %s9 = sld [smem:[#allocation0]]
  $region58: #{tpu_custom_call.1} parent=0
    _
  %s11 = ssub.s32 1, %s9
  %s12 = scalar_select 0, %s11, %s9
  $region1: #{tpu_custom_call.1} parent=0
    #allocation2 [shape = 'u8[4096]{0}', space=vmem, size = 0x1000, scoped, tag = 'input window, operand 0, single buffered']
    #allocation3 [shape = 's32[1]{0}', space=sflag, size = 0x4, scoped, tag = 'scoped memory for tpu_custom_call.1']
    #allocation4 [shape = 's32[1]{0}', space=sflag, size = 0x4, scoped, tag = 'scoped memory for tpu_custom_call.1']
    #allocation5 [shape = 'u8[32768]{0}', space=vmem, size = 0x8000, scoped, tag = 'input window, operand 1, single buffered']
    #allocation6 [shape = 's32[1]{0}', space=sflag, size = 0x4, scoped, tag = 'scoped memory for tpu_custom_call.1']
    #allocation7 [shape = 'u8[32768]{0}', space=vmem, size = 0x8000, scoped, tag = 'input window, operand 3, single buffered']
    #allocation8 [shape = 'u8[32768]{0}', space=vmem, size = 0x8000, scoped, tag = 'input window, operand 5, single buffered']
    #allocation9 [shape = 's32[1]{0}', space=sflag, size = 0x4, scoped, tag = 'scoped memory for tpu_custom_call.1']
    #allocation10 [shape = 'u8[8192]{0}', space=vmem, size = 0x2000, scoped, tag = 'output window, operand 0, single buffered']
    %13 = vsyncpa [#allocation3], 0
    %14 = vsyncpa [#allocation6], 0
    %15 = vsyncpa [#allocation9], 0
    %16 = vsyncpa [#allocation4], 0
    // Predicated region
    $region2: #{tpu_custom_call.1} parent=1 // pred_check
      _
    $region3: #{tpu_custom_call.1} parent=1 // pred_check_branch
      %18 = sbr.rel (0) target = $region5
    $region4: #{tpu_custom_call.1} parent=1 // pred_region
      %20 = vsyncadd [#allocation3], 0
      %s21 = sshll.u32 %s0, 4
      %s22 = int_to_ptr.hbm [resolvable:$true] %s21
      %s23 = sshll.u32 [#allocation2], 4
      %s24 = int_to_ptr.vmem [resolvable:$true] %s23
      %29 = dma.hbm_to_vmem [thread:$0]  %s22, 128, %s24, [#allocation3], 64, 64, 4
    $region5: #{tpu_custom_call.1} parent=1 // pred_fallthru
      _
    // Predicated region
    $region6: #{tpu_custom_call.1} parent=1 // pred_check
      _
    $region7: #{tpu_custom_call.1} parent=1 // pred_check_branch
      %31 = sbr.rel (0) target = $region9
    $region8: #{tpu_custom_call.1} parent=1 // pred_region
      %33 = vsyncadd [#allocation6], 0
      %s34 = sshll.u32 %s1, 4
      %s35 = int_to_ptr.hbm [resolvable:$true] %s34
      %s36 = sshll.u32 [#allocation5], 4
      %s37 = int_to_ptr.vmem [resolvable:$true] %s36
      %42 = dma.hbm_to_vmem [thread:$0]  %s35, 1024, %s37, [#allocation6], 64, 64, 4
    $region9: #{tpu_custom_call.1} parent=1 // pred_fallthru
      _
    // Predicated region
    $region10: #{tpu_custom_call.1} parent=1 // pred_check
      _
    $region11: #{tpu_custom_call.1} parent=1 // pred_check_branch
      %44 = sbr.rel (0) target = $region13
    $region12: #{tpu_custom_call.1} parent=1 // pred_region
      _
    $region13: #{tpu_custom_call.1} parent=1 // pred_fallthru
      _
    // Predicated region
    $region14: #{tpu_custom_call.1} parent=1 // pred_check
      _
    $region15: #{tpu_custom_call.1} parent=1 // pred_check_branch
      %46 = sbr.rel (0) target = $region17
    $region16: #{tpu_custom_call.1} parent=1 // pred_region
      %48 = vsyncadd [#allocation6], 0
      %s49 = sshll.u32 %s3, 4
      %s50 = int_to_ptr.hbm [resolvable:$true] %s49
      %s51 = sshll.u32 [#allocation7], 4
      %s52 = int_to_ptr.vmem [resolvable:$true] %s51
      %57 = dma.hbm_to_vmem [thread:$0]  %s50, 1024, %s52, [#allocation6], 64, 64, 4
    $region17: #{tpu_custom_call.1} parent=1 // pred_fallthru
      _
    // Predicated region
    $region18: #{tpu_custom_call.1} parent=1 // pred_check
      _
    $region19: #{tpu_custom_call.1} parent=1 // pred_check_branch
      %59 = sbr.rel (0) target = $region21
    $region20: #{tpu_custom_call.1} parent=1 // pred_region
      _
    $region21: #{tpu_custom_call.1} parent=1 // pred_fallthru
      _
    // Predicated region
    $region22: #{tpu_custom_call.1} parent=1 // pred_check
      _
    $region23: #{tpu_custom_call.1} parent=1 // pred_check_branch
      %61 = sbr.rel (0) target = $region25
    $region24: #{tpu_custom_call.1} parent=1 // pred_region
      %63 = vsyncadd [#allocation9], 0
      %s64 = sshll.u32 %s5, 4
      %s65 = int_to_ptr.hbm [resolvable:$true] %s64
      %s66 = sshll.u32 [#allocation8], 4
      %s67 = int_to_ptr.vmem [resolvable:$true] %s66
      %72 = dma.hbm_to_vmem [thread:$0]  %s65, 1024, %s67, [#allocation9], 64, 64, 4
    $region25: #{tpu_custom_call.1} parent=1 // pred_fallthru
      _
    // Predicated region
    $region26: #{tpu_custom_call.1} parent=1 // pred_check
      _
    $region27: #{tpu_custom_call.1} parent=1 // pred_check_branch
      %74 = sbr.rel (0) target = $region29
    $region28: #{tpu_custom_call.1} parent=1 // pred_region
      _
    $region29: #{tpu_custom_call.1} parent=1 // pred_fallthru
      _
    // Predicated region
    $region30: #{tpu_custom_call.1} parent=1 // pred_check
      _
    $region31: #{tpu_custom_call.1} parent=1 // pred_check_branch
      %76 = sbr.rel (0) target = $region33
    $region32: #{tpu_custom_call.1} parent=1 // pred_region
      _
    $region33: #{tpu_custom_call.1} parent=1 // pred_fallthru
      _
    // Predicated region
    $region34: #{tpu_custom_call.1} parent=1 // pred_check
      _
    $region35: #{tpu_custom_call.1} parent=1 // pred_check_branch
      %78 = sbr.rel (0) target = $region37
    $region36: #{tpu_custom_call.1} parent=1 // pred_region
      %80 = dma.done [#allocation3], 128
    $region37: #{tpu_custom_call.1} parent=1 // pred_fallthru
      _
    // Predicated region
    $region38: #{tpu_custom_call.1} parent=1 // pred_check
      _
    $region39: #{tpu_custom_call.1} parent=1 // pred_check_branch
      %82 = sbr.rel (0) target = $region41
    $region40: #{tpu_custom_call.1} parent=1 // pred_region
      %84 = dma.done [#allocation6], 1024
    $region41: #{tpu_custom_call.1} parent=1 // pred_fallthru
      _
    // Predicated region
    $region42: #{tpu_custom_call.1} parent=1 // pred_check
      _
    $region43: #{tpu_custom_call.1} parent=1 // pred_check_branch
      %86 = sbr.rel (0) target = $region45
    $region44: #{tpu_custom_call.1} parent=1 // pred_region
      %88 = dma.done [#allocation6], 1024
    $region45: #{tpu_custom_call.1} parent=1 // pred_fallthru
      _
    // Predicated region
    $region46: #{tpu_custom_call.1} parent=1 // pred_check
      _
    $region47: #{tpu_custom_call.1} parent=1 // pred_check_branch
      %90 = sbr.rel (0) target = $region49
    $region48: #{tpu_custom_call.1} parent=1 // pred_region
      %92 = dma.done [#allocation9], 1024
    $region49: #{tpu_custom_call.1} parent=1 // pred_fallthru
      _
    %v93 = vld [vmem:[#allocation2] sm:$0xf]
    %v94 = vld [vmem:[#allocation2 + $0x4] sm:$0xf]
    %v95 = vld [vmem:[#allocation5] sm:$0xf]
    %v96 = vld [vmem:[#allocation5 + $0x4] sm:$0xf]
    %v97 = vld [vmem:[#allocation5 + $0x8] sm:$0xf]
    %v98 = vld [vmem:[#allocation5 + $0xc] sm:$0xf]
    %v99 = vld [vmem:[#allocation5 + $0x10] sm:$0xf]
    %v100 = vld [vmem:[#allocation5 + $0x14] sm:$0xf]
    %v101 = vld [vmem:[#allocation5 + $0x18] sm:$0xf]
    %v102 = vld [vmem:[#allocation5 + $0x1c] sm:$0xf]
    %v103 = vld [vmem:[#allocation5 + $0x20] sm:$0xf]
    %v104 = vld [vmem:[#allocation5 + $0x24] sm:$0xf]
    %v105 = vld [vmem:[#allocation5 + $0x28] sm:$0xf]
    %v106 = vld [vmem:[#allocation5 + $0x2c] sm:$0xf]
    %v107 = vld [vmem:[#allocation5 + $0x30] sm:$0xf]
    %v108 = vld [vmem:[#allocation5 + $0x34] sm:$0xf]
    %v109 = vld [vmem:[#allocation5 + $0x38] sm:$0xf]
    %v110 = vld [vmem:[#allocation5 + $0x3c] sm:$0xf]
    %v111 = vld [vmem:[%s2] sm:$0x1]
    %v113 = vperm.slane %v111, 0
    %v117 = vunpack.c.l.b16 %v93
    %v118 = vunpack.c.l.b16 %v94
    %v119 = vpack.c.b16 %v118, %v117
    %v137 = vunpack.c.l.b16 %v95
    %v138 = vunpack.c.l.b16 %v96
    %v139 = vunpack.c.l.b16 %v97
    %v140 = vunpack.c.l.b16 %v98
    %v141 = vunpack.c.l.b16 %v99
    %v142 = vunpack.c.l.b16 %v100
    %v143 = vunpack.c.l.b16 %v101
    %v144 = vunpack.c.l.b16 %v102
    %v145 = vunpack.c.l.b16 %v103
    %v146 = vunpack.c.l.b16 %v104
    %v147 = vunpack.c.l.b16 %v105
    %v148 = vunpack.c.l.b16 %v106
    %v149 = vunpack.c.l.b16 %v107
    %v150 = vunpack.c.l.b16 %v108
    %v151 = vunpack.c.l.b16 %v109
    %v152 = vunpack.c.l.b16 %v110
    %v153 = vpack.c.b16 %v138, %v137
    %v154 = vpack.c.b16 %v140, %v139
    %v155 = vpack.c.b16 %v142, %v141
    %v156 = vpack.c.b16 %v144, %v143
    %v157 = vpack.c.b16 %v146, %v145
    %v158 = vpack.c.b16 %v148, %v147
    %v159 = vpack.c.b16 %v150, %v149
    %v160 = vpack.c.b16 %v152, %v151
    %169 = vmatpush.bf16.msra.mxu0 %v160
    %170 = vmatpush.bf16.msra.mxu0 %v159
    %171 = vmatpush.bf16.msra.mxu0 %v158
    %172 = vmatpush.bf16.msra.mxu0 %v157
    %173 = vmatpush.bf16.msra.mxu0 %v156
    %174 = vmatpush.bf16.msra.mxu0 %v155
    %175 = vmatpush.bf16.msra.mxu0 %v154
    %176 = vmatpush.bf16.msra.mxu0 %v153
    %177 = vmatmul.bf16.gmra.mxu0 %v119
    %v178 = vpop.f32.mrf.mxu0
    %v179 = vadd.f32 %v113, %v178
    %v180 = vpop.f32.mrf.mxu0
    %v181 = vadd.f32 %v113, %v180
    %182 = vdwg.mxu0
    %v183 = vmax.f32 %v179, 0.0
    %v184 = vmax.f32 %v181, 0.0
    %v185 = vpack.c.bf16 %v184, %v183
    %v186 = vld [vmem:[#allocation7] sm:$0xf]
    %v187 = vld [vmem:[#allocation7 + $0x4] sm:$0xf]
    %v188 = vld [vmem:[#allocation7 + $0x8] sm:$0xf]
    %v189 = vld [vmem:[#allocation7 + $0xc] sm:$0xf]
    %v190 = vld [vmem:[#allocation7 + $0x10] sm:$0xf]
    %v191 = vld [vmem:[#allocation7 + $0x14] sm:$0xf]
    %v192 = vld [vmem:[#allocation7 + $0x18] sm:$0xf]
    %v193 = vld [vmem:[#allocation7 + $0x1c] sm:$0xf]
    %v194 = vld [vmem:[#allocation7 + $0x20] sm:$0xf]
    %v195 = vld [vmem:[#allocation7 + $0x24] sm:$0xf]
    %v196 = vld [vmem:[#allocation7 + $0x28] sm:$0xf]
    %v197 = vld [vmem:[#allocation7 + $0x2c] sm:$0xf]
    %v198 = vld [vmem:[#allocation7 + $0x30] sm:$0xf]
    %v199 = vld [vmem:[#allocation7 + $0x34] sm:$0xf]
    %v200 = vld [vmem:[#allocation7 + $0x38] sm:$0xf]
    %v201 = vld [vmem:[#allocation7 + $0x3c] sm:$0xf]
    %v202 = vld [vmem:[%s4] sm:$0x1]
    %v204 = vperm.slane %v202, 0
    %v222 = vunpack.c.l.b16 %v186
    %v223 = vunpack.c.l.b16 %v187
    %v224 = vunpack.c.l.b16 %v188
    %v225 = vunpack.c.l.b16 %v189
    %v226 = vunpack.c.l.b16 %v190
    %v227 = vunpack.c.l.b16 %v191
    %v228 = vunpack.c.l.b16 %v192
    %v229 = vunpack.c.l.b16 %v193
    %v230 = vunpack.c.l.b16 %v194
    %v231 = vunpack.c.l.b16 %v195
    %v232 = vunpack.c.l.b16 %v196
    %v233 = vunpack.c.l.b16 %v197
    %v234 = vunpack.c.l.b16 %v198
    %v235 = vunpack.c.l.b16 %v199
    %v236 = vunpack.c.l.b16 %v200
    %v237 = vunpack.c.l.b16 %v201
    %v238 = vpack.c.b16 %v223, %v222
    %v239 = vpack.c.b16 %v225, %v224
    %v240 = vpack.c.b16 %v227, %v226
    %v241 = vpack.c.b16 %v229, %v228
    %v242 = vpack.c.b16 %v231, %v230
    %v243 = vpack.c.b16 %v233, %v232
    %v244 = vpack.c.b16 %v235, %v234
    %v245 = vpack.c.b16 %v237, %v236
    %254 = vmatpush.bf16.msra.mxu0 %v245
    %255 = vmatpush.bf16.msra.mxu0 %v244
    %256 = vmatpush.bf16.msra.mxu0 %v243
    %257 = vmatpush.bf16.msra.mxu0 %v242
    %258 = vmatpush.bf16.msra.mxu0 %v241
    %259 = vmatpush.bf16.msra.mxu0 %v240
    %260 = vmatpush.bf16.msra.mxu0 %v239
    %261 = vmatpush.bf16.msra.mxu0 %v238
    %262 = vmatmul.bf16.gmra.mxu0 %v185
    %v263 = vpop.f32.mrf.mxu0
    %v264 = vadd.f32 %v204, %v263
    %v265 = vpop.f32.mrf.mxu0
    %v266 = vadd.f32 %v204, %v265
    %267 = vdwg.mxu0
    %v268 = vmax.f32 %v264, 0.0
    %v269 = vmax.f32 %v266, 0.0
    %v270 = vpack.c.bf16 %v269, %v268
    %v271 = vld [vmem:[#allocation8] sm:$0xf]
    %v272 = vld [vmem:[#allocation8 + $0x4] sm:$0xf]
    %v273 = vld [vmem:[#allocation8 + $0x8] sm:$0xf]
    %v274 = vld [vmem:[#allocation8 + $0xc] sm:$0xf]
    %v275 = vld [vmem:[#allocation8 + $0x10] sm:$0xf]
    %v276 = vld [vmem:[#allocation8 + $0x14] sm:$0xf]
    %v277 = vld [vmem:[#allocation8 + $0x18] sm:$0xf]
    %v278 = vld [vmem:[#allocation8 + $0x1c] sm:$0xf]
    %v279 = vld [vmem:[#allocation8 + $0x20] sm:$0xf]
    %v280 = vld [vmem:[#allocation8 + $0x24] sm:$0xf]
    %v281 = vld [vmem:[#allocation8 + $0x28] sm:$0xf]
    %v282 = vld [vmem:[#allocation8 + $0x2c] sm:$0xf]
    %v283 = vld [vmem:[#allocation8 + $0x30] sm:$0xf]
    %v284 = vld [vmem:[#allocation8 + $0x34] sm:$0xf]
    %v285 = vld [vmem:[#allocation8 + $0x38] sm:$0xf]
    %v286 = vld [vmem:[#allocation8 + $0x3c] sm:$0xf]
    %v303 = vunpack.c.l.b16 %v271
    %v304 = vunpack.c.l.b16 %v272
    %v305 = vunpack.c.l.b16 %v273
    %v306 = vunpack.c.l.b16 %v274
    %v307 = vunpack.c.l.b16 %v275
    %v308 = vunpack.c.l.b16 %v276
    %v309 = vunpack.c.l.b16 %v277
    %v310 = vunpack.c.l.b16 %v278
    %v311 = vunpack.c.l.b16 %v279
    %v312 = vunpack.c.l.b16 %v280
    %v313 = vunpack.c.l.b16 %v281
    %v314 = vunpack.c.l.b16 %v282
    %v315 = vunpack.c.l.b16 %v283
    %v316 = vunpack.c.l.b16 %v284
    %v317 = vunpack.c.l.b16 %v285
    %v318 = vunpack.c.l.b16 %v286
    %v319 = vpack.c.b16 %v304, %v303
    %v320 = vpack.c.b16 %v306, %v305
    %v321 = vpack.c.b16 %v308, %v307
    %v322 = vpack.c.b16 %v310, %v309
    %v323 = vpack.c.b16 %v312, %v311
    %v324 = vpack.c.b16 %v314, %v313
    %v325 = vpack.c.b16 %v316, %v315
    %v326 = vpack.c.b16 %v318, %v317
    %335 = vmatpush.bf16.msra.mxu0 %v326
    %336 = vmatpush.bf16.msra.mxu0 %v325
    %337 = vmatpush.bf16.msra.mxu0 %v324
    %338 = vmatpush.bf16.msra.mxu0 %v323
    %339 = vmatpush.bf16.msra.mxu0 %v322
    %340 = vmatpush.bf16.msra.mxu0 %v321
    %341 = vmatpush.bf16.msra.mxu0 %v320
    %342 = vmatpush.bf16.msra.mxu0 %v319
    %343 = vmatmul.bf16.gmra.mxu0 %v270
    %v344 = vpop.f32.mrf.mxu0
    %v345 = vadd.f32 0.0, %v344
    %v346 = vpop.f32.mrf.mxu0
    %v347 = vadd.f32 0.0, %v346
    %348 = vdwg.mxu0
    %v349 = vlaneseq
    %v350 = vshrl.u32 %v349, 7
    %v351 = vadd.s32 %v350, 8
    %vm352 = vcmp.lt.s32.totalorder %v350, 8
    %vm353 = vcmp.lt.s32.totalorder %v351, 8
    %v354 = vsel %vm352, %v345, 0.0
    %v355 = vsel %vm353, %v347, 0.0
    %v356 = vadd.f32 %v354, %v355
    %v357 = vrot.slane %v356, 4
    %v358 = vadd.f32 %v356, %v357
    %v359 = vrot.slane %v358, 2
    %v360 = vadd.f32 %v358, %v359
    %v361 = vrot.slane %v360, 1
    %v362 = vadd.f32 %v360, %v361
    %v363 = vmul.f32 %v362, 0.125
    %v364 = vsub.f32 %v345, %v363
    %v365 = vsub.f32 %v347, %v363
    %v366 = vsel %vm352, %v364, 0.0
    %v367 = vsel %vm353, %v365, 0.0
    %v368 = vmul.f32 %v366, %v366
    %v369 = vmul.f32 %v367, %v367
    %v370 = vadd.f32 %v368, %v369
    %v371 = vrot.slane %v370, 4
    %v372 = vadd.f32 %v370, %v371
    %v373 = vrot.slane %v372, 2
    %v374 = vadd.f32 %v372, %v373
    %v375 = vrot.slane %v374, 1
    %v376 = vadd.f32 %v374, %v375
    %v377 = vmul.f32 %v376, 0.125
    %v378 = vadd.f32 %v377, 1e-05
    %v379 = vrsqrt.pop %v378
    %v380 = vmul.f32 %v379, %v378
    %v381 = vmul.f32 %v380, %v379
    %v382 = vmul.f32 0.5, %v381
    %v383 = vsub.f32 1.5, %v382
    %v384 = vmul.f32 %v379, %v383
    %vm385 = vweird.f32 %v378
    %vm386 = vweird.f32 %v379
    %vm387 = vmor %vm385, %vm386
    %v388 = vsel %vm387, %v379, %v384
    %v389 = vld [vmem:[%s6] sm:$0x1]
    %v390 = vmul.f32 %v389, %v388
    %v391 = vld [vmem:[%s7] sm:$0x1]
    %v392 = vmul.f32 %v363, %v390
    %v393 = vsub.f32 %v391, %v392
    %v395 = vperm.slane %v390, 0
    %v397 = vmul.f32 %v345, %v395
    %v398 = vmul.f32 %v347, %v395
    %v400 = vperm.slane %v393, 0
    %v402 = vadd.f32 %v397, %v400
    %v403 = vadd.f32 %v398, %v400
    %v404 = vsub.f32 0.0, %v402
    %v405 = vsub.f32 0.0, %v403
    %v406 = vmul.f32 %v404, 1.442695
    %v407 = vpow.pop %v406
    %v408 = vmul.f32 %v405, 1.442695
    %v409 = vpow.pop %v408
    %v410 = vadd.f32 %v407, 1.0
    %v411 = vadd.f32 %v409, 1.0
    %v412 = vrcp.pop %v410
    %v413 = vrcp.pop %v411
    %414 = vst [vmem:[#allocation10] sm:$0xff] %v412
    %415 = vst [vmem:[#allocation10 + $0x8] sm:$0xff] %v413
    // Predicated region
    $region50: #{tpu_custom_call.1} parent=1 // pred_check
      _
    $region51: #{tpu_custom_call.1} parent=1 // pred_check_branch
      %417 = sbr.rel (0) target = $region53
    $region52: #{tpu_custom_call.1} parent=1 // pred_region
      %419 = vsyncadd [#allocation4], 0
      %s420 = sshll.u32 [#allocation10], 4
      %s421 = int_to_ptr.vmem [resolvable:$true] %s420
      %s422 = sshll.u32 %s8, 4
      %s423 = int_to_ptr.hbm [resolvable:$true] %s422
      %428 = dma.vmem_to_hbm [thread:$0]  %s421, 256, %s423, [#allocation4], 128, 128, 8
    $region53: #{tpu_custom_call.1} parent=1 // pred_fallthru
      _
    // Predicated region
    $region54: #{tpu_custom_call.1} parent=1 // pred_check
      _
    $region55: #{tpu_custom_call.1} parent=1 // pred_check_branch
      %430 = sbr.rel (0) target = $region57
    $region56: #{tpu_custom_call.1} parent=1 // pred_region
      %432 = dma.done [#allocation4], 256
    $region57: #{tpu_custom_call.1} parent=1 // pred_fallthru
      _
    %433 = vsyncpa [#allocation3], 1
    %434 = vsyncpa [#allocation6], 1
    %435 = vsyncpa [#allocation9], 1
    %436 = vsyncpa [#allocation4], 1

</llo_original>
